<compile_context>
chip_gen: v6e
topology: v6e:2x2x1
jax: 0.10.0
libtpu: 0.0.40
codegen_flags: <defaults>
</compile_context>

<pallas_src>
import functools
import math

import jax
import jax.numpy as jnp
from jax.experimental import pallas as pl
from jax.experimental.pallas import tpu as pltpu


def _round_up(x, m):
    return ((x + m - 1) // m) * m


def _discriminator_kernel(z_ref, w_ref, b_ref, out_ref, *, c_pad):
    """One batch tile: fused two-head linear + soft symmetric-difference agreement."""
    # bf16 x bf16 -> f32 accumulation on the MXU; bias added in f32.
    y = jnp.dot(z_ref[...], w_ref[...], preferred_element_type=jnp.float32)
    y = y + b_ref[...]                                               # (tb, 2*c_pad) f32

    # Shared row max over BOTH heads: the common scale cancels exactly in
    # agree = sum(e1*e2) / (sum(e1) * sum(e2)), and it saves one XLU reduction.
    m = jnp.max(y, axis=-1, keepdims=True)                           # (tb, 1)
    e = jnp.exp(y - m)                                               # padded lanes -> 0

    e1 = e[:, :c_pad]                                                # lane-aligned slices
    e2 = e[:, c_pad:]

    s1 = jnp.sum(e1, axis=-1, keepdims=True)
    s2 = jnp.sum(e2, axis=-1, keepdims=True)
    cross = jnp.sum(e1 * e2, axis=-1, keepdims=True)

    # Exact divide (approx reciprocal drifted past tolerance; kernel is mem-bound).
    out_ref[...] = cross / (s1 * s2)                                 # (tb, 1)


def discriminator_forward(z, p, params, gamma=10.0, block_b=1024,
                          vmem_limit_bytes=48 * 1024 * 1024):
    """z: (B, H) float32, p: python scalar in [0, 1]. Returns (B, 2) float32."""
    w1, b1, w2, b2 = params

    # GRL beta — forward is identity; beta only scales the (unimplemented) backward.
    # Note: p must be a Python number here (math.exp is trace-time).
    beta = 2.0 / (1.0 + math.exp(-gamma * float(p))) - 1.0
    del beta

    B, H = z.shape
    C = w1.shape[1]
    Cp = _round_up(C, 128)                       # pad each head block to 128 lanes

    f32 = jnp.float32
    # Fused, lane-padded heads: W (H, 2*Cp) in bf16, b (1, 2*Cp) in f32.
    # Weight pad = 0, bias pad = -1e30 so exp(pad - max) == 0 exactly.
    w_pad = jnp.zeros((H, Cp - C), f32)
    b_pad = jnp.full((1, Cp - C), -1e30, f32)
    w_fused = jnp.concatenate([w1, w_pad, w2, w_pad], axis=1).astype(jnp.bfloat16)
    b_fused = jnp.concatenate([b1, b_pad, b2, b_pad], axis=1).astype(f32)

    z_in = z.astype(jnp.bfloat16)                # halve the dominant HBM stream

    # ---- tile sizing from an explicit VMEM budget --------------------------
    z_bytes_row = H * 2                          # bf16
    out_bytes_row = 1 * 4                        # f32 agree column
    per_row = 2 * z_bytes_row + 2 * out_bytes_row          # double-buffered in/out
    resident = 2 * (H * 2 * Cp * 2) + 2 * (2 * Cp * 4)     # W + b (2 bufs each)
    budget = int(0.7 * vmem_limit_bytes) - resident
    tb = max(8, min(block_b, budget // per_row))
    tb = max(8, (tb // 8) * 8)
    tb = min(tb, _round_up(B, 8))
    if B >= 16:
        # Guarantee >= 2 grid programs so the "parallel" batch axis can feed
        # both v7x TensorCores (no-op on single-TC v5e/v6e).
        tb = min(tb, _round_up(-(-B // 2), 8))
    b_padded = _round_up(B, tb)
    if b_padded != B:
        z_in = jnp.pad(z_in, ((0, b_padded - B), (0, 0)))

    kernel = functools.partial(_discriminator_kernel, c_pad=Cp)

    cost = pl.CostEstimate(
        flops=2 * b_padded * H * 2 * Cp,
        transcendentals=b_padded * 2 * Cp,
        bytes_accessed=b_padded * H * 2 + H * 2 * Cp * 2 + 2 * Cp * 4 + b_padded * 4,
    )

    agree = pl.pallas_call(
        kernel,
        out_shape=jax.ShapeDtypeStruct((b_padded, 1), jnp.float32),
        grid_spec=pltpu.PrefetchScalarGridSpec(
            num_scalar_prefetch=0,
            grid=(b_padded // tb,),
            in_specs=[
                pl.BlockSpec((tb, H), lambda i: (i, 0)),          # z tile (bf16)
                pl.BlockSpec((H, 2 * Cp), lambda i: (0, 0)),      # fused W (resident)
                pl.BlockSpec((1, 2 * Cp), lambda i: (0, 0)),      # fused b (resident)
            ],
            out_specs=pl.BlockSpec((tb, 1), lambda i: (i, 0)),    # agree column
        ),
        compiler_params=pltpu.CompilerParams(
            dimension_semantics=("parallel",),
            vmem_limit_bytes=vmem_limit_bytes,
        ),
        cost_estimate=cost,
    )(z_in, w_fused, b_fused)

    agree = agree[:B]                                             # (B, 1) f32
    # Pair construction is a trivial XLA fusion on a tiny array.
    return jnp.concatenate([agree, 1.0 - agree], axis=-1)


def init_params(key, hidden, num_classes):
    """Deterministic init of the two linear heads (PyTorch nn.Linear-style init,
    stored pre-transposed as (H, C) for the kernel)."""
    k1, k2, k3, k4 = jax.random.split(key, 4)
    bound = 1.0 / math.sqrt(hidden)
    w1 = jax.random.uniform(k1, (hidden, num_classes), jnp.float32, -bound, bound)
    b1 = jax.random.uniform(k2, (1, num_classes), jnp.float32, -bound, bound)
    w2 = jax.random.uniform(k3, (hidden, num_classes), jnp.float32, -bound, bound)
    b2 = jax.random.uniform(k4, (1, num_classes), jnp.float32, -bound, bound)
    return w1, b1, w2, b2


if __name__ == "__main__":
    key = jax.random.PRNGKey(0)
    kz, kp = jax.random.split(key)

    B, H, C = 8, 32, 4                      # batch, hidden (head input), classes
    z = jax.random.normal(kz, (B, H), jnp.float32)
    p = 0.3                                 # training-progress scalar in [0, 1]

    params = init_params(kp, H, C)

    out = discriminator_forward(z, p, params, gamma=10.0)
    out = jax.block_until_ready(out)

    assert out.shape == (B, 2) and out.dtype == jnp.float32

    # Reference of the same forward, with the same bf16 input rounding the kernel
    # uses for the MXU matmul (f32 accumulation).
    w1, b1, w2, b2 = params
    zf = z.astype(jnp.bfloat16).astype(jnp.float32)
    w1f = w1.astype(jnp.bfloat16).astype(jnp.float32)
    w2f = w2.astype(jnp.bfloat16).astype(jnp.float32)
    y1 = zf @ w1f + b1
    y2 = zf @ w2f + b2
    p1 = jax.nn.softmax(y1, axis=-1)
    p2 = jax.nn.softmax(y2, axis=-1)
    agree_ref = jnp.sum(p1 * p2, axis=-1, keepdims=True)
    ref = jnp.concatenate([agree_ref, 1.0 - agree_ref], axis=-1)

    assert jnp.allclose(out, ref, atol=2e-3, rtol=2e-3), "mismatch vs reference"

    print("KERNEL_OK")
</pallas_src>

<mosaic_0001>
module attributes {stable_mosaic.version = 11 : i64} {
  func.func @_discriminator_kernel(%arg0: i32, %arg1: memref<8x32xbf16, #tpu.memory_space<vmem>>, %arg2: memref<32x256xbf16, #tpu.memory_space<vmem>>, %arg3: memref<1x256xf32, #tpu.memory_space<vmem>>, %arg4: memref<8x1xf32, #tpu.memory_space<vmem>>) attributes {dimension_semantics = [#tpu.dimension_semantics<parallel>], iteration_bounds = array<i64: 1>, scalar_prefetch = 0 : i64, scratch_operands = 0 : i64, tpu.core_type = #tpu.core_type<tc>, window_params = [{transform_indices = @transform_0, window_bounds = array<i64: 8, 32>}, {pipeline_mode = #tpu.pipeline_mode<synchronous>, transform_indices = @transform_1, window_bounds = array<i64: 32, 256>}, {pipeline_mode = #tpu.pipeline_mode<synchronous>, transform_indices = @transform_2, window_bounds = array<i64: 1, 256>}, {transform_indices = @transform_3, window_bounds = array<i64: 8, 1>}]} {
    %c0 = arith.constant 0 : index
    %c0_0 = arith.constant 0 : index
    %0 = vector.load %arg1[%c0, %c0_0] : memref<8x32xbf16, #tpu.memory_space<vmem>>, vector<8x32xbf16>
    %c0_1 = arith.constant 0 : index
    %c0_2 = arith.constant 0 : index
    %1 = vector.load %arg2[%c0_1, %c0_2] : memref<32x256xbf16, #tpu.memory_space<vmem>>, vector<32x256xbf16>
    %cst = arith.constant dense<0.000000e+00> : vector<8x256xf32>
    %2 = tpu.matmul %0, %1, %cst {dimension_numbers = #tpu.dot_dimension_numbers<[1], [0], [0], [1], [0, 0, 1, 1], [], []>} : vector<8x32xbf16>, vector<32x256xbf16>, vector<8x256xf32> -> vector<8x256xf32>
    %c0_3 = arith.constant 0 : index
    %c0_4 = arith.constant 0 : index
    %3 = vector.load %arg3[%c0_3, %c0_4] : memref<1x256xf32, #tpu.memory_space<vmem>>, vector<1x256xf32>
    %4 = vector.broadcast %3 : vector<1x256xf32> to vector<8x256xf32>
    %5 = arith.addf %2, %4 : vector<8x256xf32>
    %cst_5 = arith.constant dense<0xFF800000> : vector<8xf32>
    %6 = vector.multi_reduction <maximumf>, %5, %cst_5 [1] : vector<8x256xf32> to vector<8xf32>
    %7 = vector.shape_cast %6 : vector<8xf32> to vector<8x1xf32>
    %8 = vector.broadcast %7 : vector<8x1xf32> to vector<8x256xf32>
    %9 = arith.subf %5, %8 : vector<8x256xf32>
    %10 = math.exp %9 : vector<8x256xf32>
    %11 = vector.extract_strided_slice %10 {offsets = [0, 0], sizes = [8, 128], strides = [1, 1]} : vector<8x256xf32> to vector<8x128xf32>
    %12 = vector.extract_strided_slice %10 {offsets = [0, 128], sizes = [8, 128], strides = [1, 1]} : vector<8x256xf32> to vector<8x128xf32>
    %cst_6 = arith.constant dense<0.000000e+00> : vector<8xf32>
    %13 = vector.multi_reduction <add>, %11, %cst_6 [1] : vector<8x128xf32> to vector<8xf32>
    %14 = vector.shape_cast %13 : vector<8xf32> to vector<8x1xf32>
    %cst_7 = arith.constant dense<0.000000e+00> : vector<8xf32>
    %15 = vector.multi_reduction <add>, %12, %cst_7 [1] : vector<8x128xf32> to vector<8xf32>
    %16 = vector.shape_cast %15 : vector<8xf32> to vector<8x1xf32>
    %17 = arith.mulf %11, %12 : vector<8x128xf32>
    %cst_8 = arith.constant dense<0.000000e+00> : vector<8xf32>
    %18 = vector.multi_reduction <add>, %17, %cst_8 [1] : vector<8x128xf32> to vector<8xf32>
    %19 = vector.shape_cast %18 : vector<8xf32> to vector<8x1xf32>
    %20 = arith.mulf %14, %16 : vector<8x1xf32>
    %21 = arith.divf %19, %20 : vector<8x1xf32>
    %c0_9 = arith.constant 0 : index
    %c0_10 = arith.constant 0 : index
    %22 = vector.load %arg4[%c0_9, %c0_10] : memref<8x1xf32, #tpu.memory_space<vmem>>, vector<8x1xf32>
    tpu.vector_store %arg4[%c0_9, %c0_10], %21 {strides = array<i32>} : memref<8x1xf32, #tpu.memory_space<vmem>>, vector<8x1xf32>,
    return
  }
  func.func @transform_0(%arg0: i32) -> (i32, i32) {
    %c0_i32 = arith.constant 0 : i32
    %c0_i32_0 = arith.constant 0 : i32
    return %arg0, %c0_i32 : i32, i32
  }
  func.func @transform_1(%arg0: i32) -> (i32, i32) {
    %c0_i32 = arith.constant 0 : i32
    %c0_i32_0 = arith.constant 0 : i32
    %c0_i32_1 = arith.constant 0 : i32
    return %c0_i32, %c0_i32_0 : i32, i32
  }
  func.func @transform_2(%arg0: i32) -> (i32, i32) {
    %c0_i32 = arith.constant 0 : i32
    %c0_i32_0 = arith.constant 0 : i32
    %c0_i32_1 = arith.constant 0 : i32
    return %c0_i32, %c0_i32_0 : i32, i32
  }
  func.func @transform_3(%arg0: i32) -> (i32, i32) {
    %c0_i32 = arith.constant 0 : i32
    %c0_i32_0 = arith.constant 0 : i32
    return %arg0, %c0_i32 : i32, i32
  }
}

</mosaic_0001>

<llo_original>
// kernel: tpu_custom_call.1
$region0: #{tpu_custom_call.1}
  #allocation0 [shape = 'u32[]', space=smem, size = 0x4, offset = 0x4, fixed_abs, tag = 'smem constant byte address 0x4 - core index']
  #allocation1 [shape = 'u32[144,128]{1,0:T(1,128)}', space=vmem, size = 0x12000, scoped, tag = 'internal scratch']
  %s0 = inlined_call_operand.hbm [shape: bf16[8,32], index: 0, kind: input, shape index: {}]
  %s1 = inlined_call_operand.hbm [shape: bf16[32,256], index: 1, kind: input, shape index: {}]
  %s2 = inlined_call_operand.vmem [shape: f32[1,256], index: 2, kind: input, shape index: {}]
  %s3 = inlined_call_operand.vmem [shape: f32[8,1], index: 3, kind: output, shape index: {}]
  %s4 = sld [smem:[#allocation0]]
  $region30: #{tpu_custom_call.1} parent=0
    _
  %s6 = ssub.s32 1, %s4
  %s7 = scalar_select 0, %s6, %s4
  $region1: #{tpu_custom_call.1} parent=0
    #allocation2 [shape = 'u8[2048]{0}', space=vmem, size = 0x800, scoped, tag = 'input window, operand 0, single buffered']
    #allocation3 [shape = 's32[1]{0}', space=sflag, size = 0x4, scoped, tag = 'scoped memory for tpu_custom_call.1']
    #allocation4 [shape = 'u8[16384]{0}', space=vmem, size = 0x4000, scoped, tag = 'input window, operand 1, single buffered']
    #allocation5 [shape = 's32[1]{0}', space=sflag, size = 0x4, scoped, tag = 'scoped memory for tpu_custom_call.1']
    %8 = vsyncpa [#allocation3], 0
    %9 = vsyncpa [#allocation5], 0
    // Predicated region
    $region2: #{tpu_custom_call.1} parent=1 // pred_check
      _
    $region3: #{tpu_custom_call.1} parent=1 // pred_check_branch
      %11 = sbr.rel (0) target = $region5
    $region4: #{tpu_custom_call.1} parent=1 // pred_region
      %s13 = ssub.s32 64, 64
      %14 = vsyncadd [#allocation3], %s13
      %s16 = sshll.u32 [#allocation2], 4
      %s17 = int_to_ptr.vmem [resolvable:$true] %s16
      %19 = dma.hbm_to_vmem [thread:$0]  %s0, 64, %s17, [#allocation3]
    $region5: #{tpu_custom_call.1} parent=1 // pred_fallthru
      _
    // Predicated region
    $region6: #{tpu_custom_call.1} parent=1 // pred_check
      _
    $region7: #{tpu_custom_call.1} parent=1 // pred_check_branch
      %21 = sbr.rel (0) target = $region9
    $region8: #{tpu_custom_call.1} parent=1 // pred_region
      %s23 = ssub.s32 512, 512
      %24 = vsyncadd [#allocation5], %s23
      %s25 = sshll.u32 [#allocation4], 4
      %s26 = int_to_ptr.vmem [resolvable:$true] %s25
      %31 = dma.hbm_to_vmem [thread:$0]  %s1, 512, %s26, [#allocation5], 128, 128, 8
    $region9: #{tpu_custom_call.1} parent=1 // pred_fallthru
      _
    // Predicated region
    $region10: #{tpu_custom_call.1} parent=1 // pred_check
      _
    $region11: #{tpu_custom_call.1} parent=1 // pred_check_branch
      %33 = sbr.rel (0) target = $region13
    $region12: #{tpu_custom_call.1} parent=1 // pred_region
      _
    $region13: #{tpu_custom_call.1} parent=1 // pred_fallthru
      _
    // Predicated region
    $region14: #{tpu_custom_call.1} parent=1 // pred_check
      _
    $region15: #{tpu_custom_call.1} parent=1 // pred_check_branch
      %35 = sbr.rel (0) target = $region17
    $region16: #{tpu_custom_call.1} parent=1 // pred_region
      %36 = dma.done [#allocation3], 64
    $region17: #{tpu_custom_call.1} parent=1 // pred_fallthru
      _
    // Predicated region
    $region18: #{tpu_custom_call.1} parent=1 // pred_check
      _
    $region19: #{tpu_custom_call.1} parent=1 // pred_check_branch
      %38 = sbr.rel (0) target = $region21
    $region20: #{tpu_custom_call.1} parent=1 // pred_region
      %39 = dma.done [#allocation5], 512
    $region21: #{tpu_custom_call.1} parent=1 // pred_fallthru
      _
    %v41 = vld [vmem:[#allocation2] sm:$0xf]
    %v42 = vld [vmem:[#allocation4] sm:$0xff]
    %v43 = vld [vmem:[#allocation4 + $0x8] sm:$0xff]
    %v44 = vld [vmem:[#allocation4 + $0x10] sm:$0xff]
    %v45 = vld [vmem:[#allocation4 + $0x18] sm:$0xff]
    %v46 = vld [vmem:[%s2] sm:$0x3]
    %v48 = vlaneseq
    %v49 = vshrl.u32 %v48, 7
    %v50 = vsub.s32 0, %v49
    %v51 = vrot.slane %v46, %v50
    %v52 = vlaneseq
    %v53 = vshrl.u32 %v52, 7
    %v54 = vsub.s32 1, %v53
    %v55 = vrot.slane %v46, %v54
    %v62 = vunpack.c.l.b16 %v42
    %v63 = vunpack.c.h.b16 %v42
    %v64 = vunpack.c.l.b16 %v43
    %v65 = vunpack.c.h.b16 %v43
    %v66 = vunpack.c.l.b16 %v44
    %v67 = vunpack.c.h.b16 %v44
    %v68 = vunpack.c.l.b16 %v45
    %v69 = vunpack.c.h.b16 %v45
    %v70 = vpack.c.b16 %v64, %v62
    %v71 = vpack.c.b16 %v65, %v63
    %v72 = vpack.c.b16 %v68, %v66
    %v73 = vpack.c.b16 %v69, %v67
    %vm78 = vcmask 261120
    %v80 = vsel %vm78, %v41, 0
    %82 = vmatprep.subr.bf16.mxu0 0
    %83 = vmatpush1.bf16.msra.mxu0 0
    %84 = vmatprep.subr.bf16.mxu0 0
    %85 = vmatpush1.bf16.msra.mxu0 0
    %86 = vmatprep.subr.bf16.mxu0 0
    %87 = vmatpush1.bf16.msra.mxu0 0
    %88 = vmatprep.subr.bf16.mxu0 0
    %89 = vmatpush1.bf16.msra.mxu0 0
    %90 = vmatprep.subr.bf16.mxu0 0
    %91 = vmatpush1.bf16.msra.mxu0 0
    %92 = vmatprep.subr.bf16.mxu0 0
    %93 = vmatpush1.bf16.msra.mxu0 0
    %94 = vmatprep.subr.bf16.mxu0 %v73
    %95 = vmatpush1.bf16.msra.mxu0 %v72
    %96 = vmatprep.subr.bf16.mxu0 %v71
    %97 = vmatpush1.bf16.msra.mxu0 %v70
    %98 = vmatprep.subr.bf16.mxu0 0
    %99 = vmatpush2.bf16.msra.mxu0 0
    %100 = vmatprep.subr.bf16.mxu0 0
    %101 = vmatpush2.bf16.msra.mxu0 0
    %102 = vmatprep.subr.bf16.mxu0 0
    %103 = vmatpush2.bf16.msra.mxu0 0
    %104 = vmatprep.subr.bf16.mxu0 0
    %105 = vmatpush2.bf16.msra.mxu0 0
    %106 = vmatprep.subr.bf16.mxu0 0
    %107 = vmatpush2.bf16.msra.mxu0 0
    %108 = vmatprep.subr.bf16.mxu0 0
    %109 = vmatpush2.bf16.msra.mxu0 0
    %110 = vmatprep.subr.bf16.mxu0 0
    %111 = vmatpush2.bf16.msra.mxu0 0
    %112 = vmatprep.subr.bf16.mxu0 0
    %113 = vmatpush2.bf16.msra.mxu0 0
    %114 = vmatprep.mubr.bf16.mxu0 0
    %115 = vmatmul.mubr.bf16.gmra.mxu0 %v80
    %v116 = vpop.f32.mrf.mxu0
    %v117 = vadd.f32 %v51, %v116
    %v118 = vpop.f32.mrf.mxu0
    %v119 = vadd.f32 %v55, %v118
    %v120 = vpop.f32.mrf.mxu0
    %v121 = vpop.f32.mrf.mxu0
    %122 = vdwg.mxu0
    %v123 = vmax.f32 %v117, %v119
    %124 = vmax.xlane.f32.xlu0 %v123
    %v125 = vpop.xlane.xlu0 %124
    %v126 = vsub.f32 %v117, %v125
    %v127 = vsub.f32 %v119, %v125
    %v128 = vmul.f32 %v126, 1.442695
    %v129 = vpow.pop %v128
    %v130 = vmul.f32 %v127, 1.442695
    %v131 = vpow.pop %v130
    %132 = vadd.xlane.f32.xlu0 %v129
    %v133 = vpop.xlane.xlu0 %132
    %134 = vadd.xlane.f32.xlu0 %v131
    %v135 = vpop.xlane.xlu0 %134
    %v136 = vmul.f32 %v129, %v131
    %137 = vadd.xlane.f32.xlu0 %v136
    %v138 = vpop.xlane.xlu0 %137
    %v139 = vmul.f32 %v133, %v135
    %v140 = vrcp.pop %v139
    %v141 = vmul.f32 %v138, %v140
    %vm142 = vcmask 7168
    %143 = vst.msk [vmem:[%s3] sm:$0xff] %vm142, %v141
    // Predicated region
    $region22: #{tpu_custom_call.1} parent=1 // pred_check
      _
    $region23: #{tpu_custom_call.1} parent=1 // pred_check_branch
      %145 = sbr.rel (0) target = $region25
    $region24: #{tpu_custom_call.1} parent=1 // pred_region
      _
    $region25: #{tpu_custom_call.1} parent=1 // pred_fallthru
      _
    // Predicated region
    $region26: #{tpu_custom_call.1} parent=1 // pred_check
      _
    $region27: #{tpu_custom_call.1} parent=1 // pred_check_branch
      %147 = sbr.rel (0) target = $region29
    $region28: #{tpu_custom_call.1} parent=1 // pred_region
      _
    $region29: #{tpu_custom_call.1} parent=1 // pred_fallthru
      _
    %148 = vsyncpa [#allocation3], 1
    %149 = vsyncpa [#allocation5], 1

</llo_original>
